<compile_context>
chip_gen: v7x
topology: tpu7x:2x2x1
jax: 0.10.0
libtpu: 0.0.40
codegen_flags: <defaults>
</compile_context>

<pallas_src>
import jax
import jax.numpy as jnp
from jax.experimental import pallas as pl
from jax.experimental.pallas import tpu as pltpu

LOG_STD_MAX = 2.0
LOG_STD_MIN = -5.0

HIDDEN1 = 16
HIDDEN2 = 32


def _round_up(x, m):
    return ((x + m - 1) // m) * m


def _cdiv(a, b):
    return (a + b - 1) // b


def _policy_kernel(x_ref, w1_ref, b1_ref, w2_ref, b2_ref, wm_ref, bm_ref,
                   ws_ref, bs_ref, mean_ref, logstd_ref):
    """One TB-row batch tile of the full forward pass.

    ws_ref / bs_ref already have the log_std affine folded in
    (ws = a*Ws, bs = a*bs + LOG_STD_MIN + a), so the heads are plain affines.
    """
    x = x_ref[...]

    # Layer 1: Linear(obs -> 16) + tanh
    h1 = jnp.dot(x, w1_ref[...], preferred_element_type=jnp.float32) + b1_ref[...]
    h1 = jnp.tanh(h1)

    # Layer 2: Linear(16 -> 32) + tanh
    h2 = jnp.dot(h1, w2_ref[...], preferred_element_type=jnp.float32) + b2_ref[...]
    h2 = jnp.tanh(h2)

    # Heads: narrow (act_dims-wide) outputs, written directly.
    mean = jnp.dot(h2, wm_ref[...], preferred_element_type=jnp.float32) + bm_ref[...]
    log_std = jnp.dot(h2, ws_ref[...], preferred_element_type=jnp.float32) + bs_ref[...]

    mean_ref[...] = mean.astype(mean_ref.dtype)
    logstd_ref[...] = log_std.astype(logstd_ref.dtype)


def policy_network_forward(x, params, *, block_b=2048, out_dtype=jnp.float32):
    """x: [B, obs_dims] float32. params: dict of transposed weights/biases.

    Returns (mean, log_std), each [B, act_dims] in `out_dtype`.
    """
    B, obs_dims = x.shape
    act_dims = params["wm"].shape[1]

    # --- Fold the log_std squash into the head weights (trace-time, tiny). ---
    # log_std = MIN + 0.5*(MAX-MIN)*(y + 1) = a*y + c, y = h @ Ws + bs
    #         = h @ (a*Ws) + (a*bs + c)
    a = 0.5 * (LOG_STD_MAX - LOG_STD_MIN)
    c = LOG_STD_MIN + a
    ws_f = a * params["ws"]
    bs_f = a * params["bs"] + c

    # --- Batch tiling: balanced tiles, >= 2 grid steps when B allows it ------
    # (so v7x's second TensorCore gets work), tile count rounded to even.
    min_tiles = 2 if B >= 16 else 1
    n_tiles = max(min_tiles, _cdiv(B, block_b))
    if n_tiles > 1 and n_tiles % 2:
        n_tiles += 1                      # balanced split across 2 cores
    tb = _round_up(_cdiv(B, n_tiles), 8)  # 8-row (sublane) aligned tile
    b_pad = tb * n_tiles
    if b_pad != B:
        x = jnp.pad(x, ((0, b_pad - B), (0, 0)))
    grid = (n_tiles,)

    # TODO(synk): for bandwidth-critical large-B use on v6e/v7x, feed x (and
    # optionally the weights) as bfloat16 with f32 MXU accumulation and pass
    # out_dtype=jnp.bfloat16; kept f32 by default for exact reference parity.
    mean, log_std = pl.pallas_call(
        _policy_kernel,
        out_shape=(
            jax.ShapeDtypeStruct((b_pad, act_dims), out_dtype),
            jax.ShapeDtypeStruct((b_pad, act_dims), out_dtype),
        ),
        grid=grid,
        in_specs=[
            pl.BlockSpec((tb, obs_dims), lambda i: (i, 0)),        # x tile
            pl.BlockSpec(params["w1"].shape, lambda i: (0, 0)),    # resident W1
            pl.BlockSpec(params["b1"].shape, lambda i: (0, 0)),
            pl.BlockSpec(params["w2"].shape, lambda i: (0, 0)),    # resident W2
            pl.BlockSpec(params["b2"].shape, lambda i: (0, 0)),
            pl.BlockSpec(params["wm"].shape, lambda i: (0, 0)),    # mean head
            pl.BlockSpec(params["bm"].shape, lambda i: (0, 0)),
            pl.BlockSpec(ws_f.shape, lambda i: (0, 0)),            # logstd head (folded)
            pl.BlockSpec(bs_f.shape, lambda i: (0, 0)),
        ],
        out_specs=(
            pl.BlockSpec((tb, act_dims), lambda i: (i, 0)),        # mean
            pl.BlockSpec((tb, act_dims), lambda i: (i, 0)),        # log_std
        ),
        compiler_params=pltpu.CompilerParams(
            dimension_semantics=("parallel",),      # megacore sharding on v7x
            vmem_limit_bytes=32 * 1024 * 1024,      # ample headroom (v7x: 64 MiB)
        ),
    )(x, params["w1"], params["b1"], params["w2"], params["b2"],
      params["wm"], params["bm"], ws_f, bs_f)

    if b_pad != B:
        mean = mean[:B]
        log_std = log_std[:B]
    return mean, log_std


def init_params(key, obs_dims, act_dims):
    """Deterministic init; weights stored as [in, out] (transpose of torch)."""
    ks = jax.random.split(key, 8)

    def linear(kw, kb, fan_in, fan_out):
        # mimic torch's uniform(-1/sqrt(fan_in), 1/sqrt(fan_in)) init
        bound = 1.0 / jnp.sqrt(jnp.float32(fan_in))
        w = jax.random.uniform(kw, (fan_in, fan_out), jnp.float32, -bound, bound)
        b = jax.random.uniform(kb, (1, fan_out), jnp.float32, -bound, bound)
        return w, b

    w1, b1 = linear(ks[0], ks[1], obs_dims, HIDDEN1)
    w2, b2 = linear(ks[2], ks[3], HIDDEN1, HIDDEN2)
    wm, bm = linear(ks[4], ks[5], HIDDEN2, act_dims)
    ws, bs = linear(ks[6], ks[7], HIDDEN2, act_dims)
    return dict(w1=w1, b1=b1, w2=w2, b2=b2, wm=wm, bm=bm, ws=ws, bs=bs)


def reference_forward(x, p):
    h = jnp.tanh(x @ p["w1"] + p["b1"])
    h = jnp.tanh(h @ p["w2"] + p["b2"])
    mean = h @ p["wm"] + p["bm"]
    log_std = h @ p["ws"] + p["bs"]
    log_std = LOG_STD_MIN + 0.5 * (LOG_STD_MAX - LOG_STD_MIN) * (log_std + 1.0)
    return mean, log_std


if __name__ == "__main__":
    key = jax.random.PRNGKey(0)
    k_x, k_p = jax.random.split(key)

    B = 8            # batch of observations
    obs_dims = 4     # small continuous-control observation
    act_dims = 2     # action dimensionality

    x = jax.random.normal(k_x, (B, obs_dims), dtype=jnp.float32)
    params = init_params(k_p, obs_dims, act_dims)

    mean, log_std = policy_network_forward(x, params)
    mean, log_std = jax.block_until_ready((mean, log_std))

    ref_mean, ref_log_std = reference_forward(x, params)
    assert mean.shape == (B, act_dims) and log_std.shape == (B, act_dims)
    assert jnp.allclose(mean, ref_mean, atol=1e-5, rtol=1e-5)
    assert jnp.allclose(log_std, ref_log_std, atol=1e-5, rtol=1e-5)

    # Also exercise a batch that is not a multiple of the tile size.
    B2 = 13
    x2 = jax.random.normal(jax.random.PRNGKey(1), (B2, obs_dims), jnp.float32)
    m2, s2 = jax.block_until_ready(policy_network_forward(x2, params))
    rm2, rs2 = reference_forward(x2, params)
    assert m2.shape == (B2, act_dims) and s2.shape == (B2, act_dims)
    assert jnp.allclose(m2, rm2, atol=1e-5, rtol=1e-5)
    assert jnp.allclose(s2, rs2, atol=1e-5, rtol=1e-5)

    # Mid-size batch: exercises the multi-tile (>=2 grid steps) path.
    B3 = 1025
    x3 = jax.random.normal(jax.random.PRNGKey(2), (B3, obs_dims), jnp.float32)
    m3, s3 = jax.block_until_ready(policy_network_forward(x3, params))
    rm3, rs3 = reference_forward(x3, params)
    assert jnp.allclose(m3, rm3, atol=1e-5, rtol=1e-5)
    assert jnp.allclose(s3, rs3, atol=1e-5, rtol=1e-5)

    print("KERNEL_OK")
</pallas_src>

<mosaic_0001>
module attributes {stable_mosaic.version = 11 : i64} {
  func.func @_policy_kernel(%arg0: i32, %arg1: memref<8x4xf32, #tpu.memory_space<vmem>>, %arg2: memref<4x16xf32, #tpu.memory_space<vmem>>, %arg3: memref<1x16xf32, #tpu.memory_space<vmem>>, %arg4: memref<16x32xf32, #tpu.memory_space<vmem>>, %arg5: memref<1x32xf32, #tpu.memory_space<vmem>>, %arg6: memref<32x2xf32, #tpu.memory_space<vmem>>, %arg7: memref<1x2xf32, #tpu.memory_space<vmem>>, %arg8: memref<32x2xf32, #tpu.memory_space<vmem>>, %arg9: memref<1x2xf32, #tpu.memory_space<vmem>>, %arg10: memref<8x2xf32, #tpu.memory_space<vmem>>, %arg11: memref<8x2xf32, #tpu.memory_space<vmem>>) attributes {dimension_semantics = [#tpu.dimension_semantics<parallel>], iteration_bounds = array<i64: 1>, scalar_prefetch = 0 : i64, scratch_operands = 0 : i64, tpu.core_type = #tpu.core_type<tc>, window_params = [{transform_indices = @transform_0, window_bounds = array<i64: 8, 4>}, {pipeline_mode = #tpu.pipeline_mode<synchronous>, transform_indices = @transform_1, window_bounds = array<i64: 4, 16>}, {pipeline_mode = #tpu.pipeline_mode<synchronous>, transform_indices = @transform_2, window_bounds = array<i64: 1, 16>}, {pipeline_mode = #tpu.pipeline_mode<synchronous>, transform_indices = @transform_3, window_bounds = array<i64: 16, 32>}, {pipeline_mode = #tpu.pipeline_mode<synchronous>, transform_indices = @transform_4, window_bounds = array<i64: 1, 32>}, {pipeline_mode = #tpu.pipeline_mode<synchronous>, transform_indices = @transform_5, window_bounds = array<i64: 32, 2>}, {pipeline_mode = #tpu.pipeline_mode<synchronous>, transform_indices = @transform_6, window_bounds = array<i64: 1, 2>}, {pipeline_mode = #tpu.pipeline_mode<synchronous>, transform_indices = @transform_7, window_bounds = array<i64: 32, 2>}, {pipeline_mode = #tpu.pipeline_mode<synchronous>, transform_indices = @transform_8, window_bounds = array<i64: 1, 2>}, {transform_indices = @transform_9, window_bounds = array<i64: 8, 2>}, {transform_indices = @transform_10, window_bounds = array<i64: 8, 2>}]} {
    %c0 = arith.constant 0 : index
    %c0_0 = arith.constant 0 : index
    %0 = vector.load %arg1[%c0, %c0_0] : memref<8x4xf32, #tpu.memory_space<vmem>>, vector<8x4xf32>
    %c0_1 = arith.constant 0 : index
    %c0_2 = arith.constant 0 : index
    %1 = vector.load %arg2[%c0_1, %c0_2] : memref<4x16xf32, #tpu.memory_space<vmem>>, vector<4x16xf32>
    %cst = arith.constant dense<0.000000e+00> : vector<8x16xf32>
    %2 = tpu.matmul %0, %1, %cst {dimension_numbers = #tpu.dot_dimension_numbers<[1], [0], [0], [1], [0, 0, 1, 1], [], []>} : vector<8x4xf32>, vector<4x16xf32>, vector<8x16xf32> -> vector<8x16xf32>
    %c0_3 = arith.constant 0 : index
    %c0_4 = arith.constant 0 : index
    %3 = vector.load %arg3[%c0_3, %c0_4] : memref<1x16xf32, #tpu.memory_space<vmem>>, vector<1x16xf32>
    %4 = vector.broadcast %3 : vector<1x16xf32> to vector<8x16xf32>
    %5 = arith.addf %2, %4 : vector<8x16xf32>
    %6 = math.tanh %5 : vector<8x16xf32>
    %c0_5 = arith.constant 0 : index
    %c0_6 = arith.constant 0 : index
    %7 = vector.load %arg4[%c0_5, %c0_6] : memref<16x32xf32, #tpu.memory_space<vmem>>, vector<16x32xf32>
    %cst_7 = arith.constant dense<0.000000e+00> : vector<8x32xf32>
    %8 = tpu.matmul %6, %7, %cst_7 {dimension_numbers = #tpu.dot_dimension_numbers<[1], [0], [0], [1], [0, 0, 1, 1], [], []>} : vector<8x16xf32>, vector<16x32xf32>, vector<8x32xf32> -> vector<8x32xf32>
    %c0_8 = arith.constant 0 : index
    %c0_9 = arith.constant 0 : index
    %9 = vector.load %arg5[%c0_8, %c0_9] : memref<1x32xf32, #tpu.memory_space<vmem>>, vector<1x32xf32>
    %10 = vector.broadcast %9 : vector<1x32xf32> to vector<8x32xf32>
    %11 = arith.addf %8, %10 : vector<8x32xf32>
    %12 = math.tanh %11 : vector<8x32xf32>
    %c0_10 = arith.constant 0 : index
    %c0_11 = arith.constant 0 : index
    %13 = vector.load %arg6[%c0_10, %c0_11] : memref<32x2xf32, #tpu.memory_space<vmem>>, vector<32x2xf32>
    %cst_12 = arith.constant dense<0.000000e+00> : vector<8x2xf32>
    %14 = tpu.matmul %12, %13, %cst_12 {dimension_numbers = #tpu.dot_dimension_numbers<[1], [0], [0], [1], [0, 0, 1, 1], [], []>} : vector<8x32xf32>, vector<32x2xf32>, vector<8x2xf32> -> vector<8x2xf32>
    %c0_13 = arith.constant 0 : index
    %c0_14 = arith.constant 0 : index
    %15 = vector.load %arg7[%c0_13, %c0_14] : memref<1x2xf32, #tpu.memory_space<vmem>>, vector<1x2xf32>
    %16 = vector.broadcast %15 : vector<1x2xf32> to vector<8x2xf32>
    %17 = arith.addf %14, %16 : vector<8x2xf32>
    %c0_15 = arith.constant 0 : index
    %c0_16 = arith.constant 0 : index
    %18 = vector.load %arg8[%c0_15, %c0_16] : memref<32x2xf32, #tpu.memory_space<vmem>>, vector<32x2xf32>
    %cst_17 = arith.constant dense<0.000000e+00> : vector<8x2xf32>
    %19 = tpu.matmul %12, %18, %cst_17 {dimension_numbers = #tpu.dot_dimension_numbers<[1], [0], [0], [1], [0, 0, 1, 1], [], []>} : vector<8x32xf32>, vector<32x2xf32>, vector<8x2xf32> -> vector<8x2xf32>
    %c0_18 = arith.constant 0 : index
    %c0_19 = arith.constant 0 : index
    %20 = vector.load %arg9[%c0_18, %c0_19] : memref<1x2xf32, #tpu.memory_space<vmem>>, vector<1x2xf32>
    %21 = vector.broadcast %20 : vector<1x2xf32> to vector<8x2xf32>
    %22 = arith.addf %19, %21 : vector<8x2xf32>
    %c0_20 = arith.constant 0 : index
    %c0_21 = arith.constant 0 : index
    %23 = vector.load %arg10[%c0_20, %c0_21] : memref<8x2xf32, #tpu.memory_space<vmem>>, vector<8x2xf32>
    tpu.vector_store %arg10[%c0_20, %c0_21], %17 {strides = array<i32>} : memref<8x2xf32, #tpu.memory_space<vmem>>, vector<8x2xf32>,
    %c0_22 = arith.constant 0 : index
    %c0_23 = arith.constant 0 : index
    %24 = vector.load %arg11[%c0_22, %c0_23] : memref<8x2xf32, #tpu.memory_space<vmem>>, vector<8x2xf32>
    tpu.vector_store %arg11[%c0_22, %c0_23], %22 {strides = array<i32>} : memref<8x2xf32, #tpu.memory_space<vmem>>, vector<8x2xf32>,
    return
  }
  func.func @transform_0(%arg0: i32) -> (i32, i32) {
    %c0_i32 = arith.constant 0 : i32
    %c0_i32_0 = arith.constant 0 : i32
    return %arg0, %c0_i32 : i32, i32
  }
  func.func @transform_1(%arg0: i32) -> (i32, i32) {
    %c0_i32 = arith.constant 0 : i32
    %c0_i32_0 = arith.constant 0 : i32
    %c0_i32_1 = arith.constant 0 : i32
    return %c0_i32, %c0_i32_0 : i32, i32
  }
  func.func @transform_2(%arg0: i32) -> (i32, i32) {
    %c0_i32 = arith.constant 0 : i32
    %c0_i32_0 = arith.constant 0 : i32
    %c0_i32_1 = arith.constant 0 : i32
    return %c0_i32, %c0_i32_0 : i32, i32
  }
  func.func @transform_3(%arg0: i32) -> (i32, i32) {
    %c0_i32 = arith.constant 0 : i32
    %c0_i32_0 = arith.constant 0 : i32
    %c0_i32_1 = arith.constant 0 : i32
    return %c0_i32, %c0_i32_0 : i32, i32
  }
  func.func @transform_4(%arg0: i32) -> (i32, i32) {
    %c0_i32 = arith.constant 0 : i32
    %c0_i32_0 = arith.constant 0 : i32
    %c0_i32_1 = arith.constant 0 : i32
    return %c0_i32, %c0_i32_0 : i32, i32
  }
  func.func @transform_5(%arg0: i32) -> (i32, i32) {
    %c0_i32 = arith.constant 0 : i32
    %c0_i32_0 = arith.constant 0 : i32
    %c0_i32_1 = arith.constant 0 : i32
    return %c0_i32, %c0_i32_0 : i32, i32
  }
  func.func @transform_6(%arg0: i32) -> (i32, i32) {
    %c0_i32 = arith.constant 0 : i32
    %c0_i32_0 = arith.constant 0 : i32
    %c0_i32_1 = arith.constant 0 : i32
    return %c0_i32, %c0_i32_0 : i32, i32
  }
  func.func @transform_7(%arg0: i32) -> (i32, i32) {
    %c0_i32 = arith.constant 0 : i32
    %c0_i32_0 = arith.constant 0 : i32
    %c0_i32_1 = arith.constant 0 : i32
    return %c0_i32, %c0_i32_0 : i32, i32
  }
  func.func @transform_8(%arg0: i32) -> (i32, i32) {
    %c0_i32 = arith.constant 0 : i32
    %c0_i32_0 = arith.constant 0 : i32
    %c0_i32_1 = arith.constant 0 : i32
    return %c0_i32, %c0_i32_0 : i32, i32
  }
  func.func @transform_9(%arg0: i32) -> (i32, i32) {
    %c0_i32 = arith.constant 0 : i32
    %c0_i32_0 = arith.constant 0 : i32
    return %arg0, %c0_i32 : i32, i32
  }
  func.func @transform_10(%arg0: i32) -> (i32, i32) {
    %c0_i32 = arith.constant 0 : i32
    %c0_i32_0 = arith.constant 0 : i32
    return %arg0, %c0_i32 : i32, i32
  }
}

</mosaic_0001>

<llo_original>
// kernel: tpu_custom_call.1
$region0: #{tpu_custom_call.1}
  #allocation0 [shape = 'u32[]', space=smem, size = 0x4, offset = 0x4, fixed_abs, tag = 'smem constant byte address 0x4 - core index']
  #allocation1 [shape = 'u32[144,128]{1,0:T(1,128)}', space=vmem, size = 0x12000, scoped, tag = 'internal scratch']
  %s0 = inlined_call_operand.vmem [shape: f32[8,4], index: 0, kind: input, shape index: {}]
  %s1 = inlined_call_operand.vmem [shape: f32[4,16], index: 1, kind: input, shape index: {}]
  %s2 = inlined_call_operand.vmem [shape: f32[1,16], index: 2, kind: input, shape index: {}]
  %s3 = inlined_call_operand.vmem [shape: f32[16,32], index: 3, kind: input, shape index: {}]
  %s4 = inlined_call_operand.vmem [shape: f32[1,32], index: 4, kind: input, shape index: {}]
  %s5 = inlined_call_operand.vmem [shape: f32[32,2], index: 5, kind: input, shape index: {}]
  %s6 = inlined_call_operand.vmem [shape: f32[1,2], index: 6, kind: input, shape index: {}]
  %s7 = inlined_call_operand.vmem [shape: f32[32,2], index: 7, kind: input, shape index: {}]
  %s8 = inlined_call_operand.vmem [shape: f32[1,2], index: 8, kind: input, shape index: {}]
  %s9 = inlined_call_operand.vmem [shape: f32[8,2], index: 9, kind: output, shape index: {0}]
  %s10 = inlined_call_operand.vmem [shape: f32[8,2], index: 10, kind: output, shape index: {1}]
  %11 = xla_tuple %s9, %s10
  %s12 = sld [smem:[#allocation0]]
  $region54: #{tpu_custom_call.1} parent=0
    _
  %s14 = ssub.s32 1, %s12
  %s15 = scalar_select 0, %s14, %s12
  // Predicated region
  $region2: #{tpu_custom_call.1} parent=0 // pred_check
    _
  $region3: #{tpu_custom_call.1} parent=0 // pred_check_branch
    %17 = sbr.rel (0) target = $region5
  $region4: #{tpu_custom_call.1} parent=0 // pred_region
    _
  $region5: #{tpu_custom_call.1} parent=0 // pred_fallthru
    _
  // Predicated region
  $region6: #{tpu_custom_call.1} parent=0 // pred_check
    _
  $region7: #{tpu_custom_call.1} parent=0 // pred_check_branch
    %19 = sbr.rel (0) target = $region9
  $region8: #{tpu_custom_call.1} parent=0 // pred_region
    _
  $region9: #{tpu_custom_call.1} parent=0 // pred_fallthru
    _
  // Predicated region
  $region10: #{tpu_custom_call.1} parent=0 // pred_check
    _
  $region11: #{tpu_custom_call.1} parent=0 // pred_check_branch
    %21 = sbr.rel (0) target = $region13
  $region12: #{tpu_custom_call.1} parent=0 // pred_region
    _
  $region13: #{tpu_custom_call.1} parent=0 // pred_fallthru
    _
  // Predicated region
  $region14: #{tpu_custom_call.1} parent=0 // pred_check
    _
  $region15: #{tpu_custom_call.1} parent=0 // pred_check_branch
    %23 = sbr.rel (0) target = $region17
  $region16: #{tpu_custom_call.1} parent=0 // pred_region
    _
  $region17: #{tpu_custom_call.1} parent=0 // pred_fallthru
    _
  // Predicated region
  $region18: #{tpu_custom_call.1} parent=0 // pred_check
    _
  $region19: #{tpu_custom_call.1} parent=0 // pred_check_branch
    %25 = sbr.rel (0) target = $region21
  $region20: #{tpu_custom_call.1} parent=0 // pred_region
    _
  $region21: #{tpu_custom_call.1} parent=0 // pred_fallthru
    _
  // Predicated region
  $region22: #{tpu_custom_call.1} parent=0 // pred_check
    _
  $region23: #{tpu_custom_call.1} parent=0 // pred_check_branch
    %27 = sbr.rel (0) target = $region25
  $region24: #{tpu_custom_call.1} parent=0 // pred_region
    _
  $region25: #{tpu_custom_call.1} parent=0 // pred_fallthru
    _
  // Predicated region
  $region26: #{tpu_custom_call.1} parent=0 // pred_check
    _
  $region27: #{tpu_custom_call.1} parent=0 // pred_check_branch
    %29 = sbr.rel (0) target = $region29
  $region28: #{tpu_custom_call.1} parent=0 // pred_region
    _
  $region29: #{tpu_custom_call.1} parent=0 // pred_fallthru
    _
  // Predicated region
  $region30: #{tpu_custom_call.1} parent=0 // pred_check
    _
  $region31: #{tpu_custom_call.1} parent=0 // pred_check_branch
    %31 = sbr.rel (0) target = $region33
  $region32: #{tpu_custom_call.1} parent=0 // pred_region
    _
  $region33: #{tpu_custom_call.1} parent=0 // pred_fallthru
    _
  // Predicated region
  $region34: #{tpu_custom_call.1} parent=0 // pred_check
    _
  $region35: #{tpu_custom_call.1} parent=0 // pred_check_branch
    %33 = sbr.rel (0) target = $region37
  $region36: #{tpu_custom_call.1} parent=0 // pred_region
    _
  $region37: #{tpu_custom_call.1} parent=0 // pred_fallthru
    _
  %v34 = vld [vmem:[%s0] sm:$0xff]
  %v35 = vld [vmem:[%s1] sm:$0xf]
  %v36 = vld [vmem:[%s2] sm:$0x1]
  %v38 = vlaneseq
  %v39 = vshrl.u32 %v38, 7
  %v40 = vsub.s32 0, %v39
  %v41 = vrot.slane %v36, %v40
  %vm43 = vcmask 31744
  %v45 = vsel %vm43, %v34, 0
  %vm47 = vcmask 1043456
  %v49 = vsel %vm47, %v35, 0
  %51 = vmatprep.subr.mxu0 0.0
  %52 = vmatpush1.msra.mxu0 %v49
  %53 = vmatprep.subr.mxu0 0.0
  %54 = vmatpush1.msra.mxu0 0.0
  %55 = vmatprep.subr.mxu0 0.0
  %56 = vmatpush1.msra.mxu0 0.0
  %57 = vmatprep.subr.mxu0 0.0
  %58 = vmatpush1.msra.mxu0 0.0
  %59 = vmatprep.subr.mxu0 0.0
  %60 = vmatpush1.msra.mxu0 0.0
  %61 = vmatprep.subr.mxu0 0.0
  %62 = vmatpush1.msra.mxu0 0.0
  %63 = vmatprep.subr.mxu0 0.0
  %64 = vmatpush1.msra.mxu0 0.0
  %65 = vmatprep.subr.mxu0 0.0
  %66 = vmatpush1.msra.mxu0 0.0
  %67 = vmatprep.subr.mxu0 0.0
  %68 = vmatpush1.msra.mxu0 0.0
  %69 = vmatprep.subr.mxu0 0.0
  %70 = vmatpush1.msra.mxu0 0.0
  %71 = vmatprep.subr.mxu0 0.0
  %72 = vmatpush1.msra.mxu0 0.0
  %73 = vmatprep.subr.mxu0 0.0
  %74 = vmatpush1.msra.mxu0 0.0
  %75 = vmatprep.subr.mxu0 0.0
  %76 = vmatpush1.msra.mxu0 0.0
  %77 = vmatprep.subr.mxu0 0.0
  %78 = vmatpush1.msra.mxu0 0.0
  %79 = vmatprep.subr.mxu0 0.0
  %80 = vmatpush1.msra.mxu0 0.0
  %81 = vmatprep.subr.mxu0 0.0
  %82 = vmatpush1.msra.mxu0 0.0
  %83 = vmatprep.subr.mxu0 0.0
  %84 = vmatpush1.msra.mxu0 0.0
  %85 = vmatprep.subr.mxu0 0.0
  %86 = vmatpush1.msra.mxu0 0.0
  %87 = vmatprep.subr.mxu0 0.0
  %88 = vmatpush1.msra.mxu0 0.0
  %89 = vmatprep.subr.mxu0 0.0
  %90 = vmatpush1.msra.mxu0 0.0
  %91 = vmatprep.subr.mxu0 0.0
  %92 = vmatpush1.msra.mxu0 0.0
  %93 = vmatprep.subr.mxu0 0.0
  %94 = vmatpush1.msra.mxu0 0.0
  %95 = vmatprep.subr.mxu0 0.0
  %96 = vmatpush1.msra.mxu0 0.0
  %97 = vmatprep.subr.mxu0 0.0
  %98 = vmatpush1.msra.mxu0 0.0
  %99 = vmatprep.subr.mxu0 0.0
  %100 = vmatpush1.msra.mxu0 0.0
  %101 = vmatprep.subr.mxu0 0.0
  %102 = vmatpush1.msra.mxu0 0.0
  %103 = vmatprep.subr.mxu0 0.0
  %104 = vmatpush1.msra.mxu0 0.0
  %105 = vmatprep.subr.mxu0 0.0
  %106 = vmatpush1.msra.mxu0 0.0
  %107 = vmatprep.subr.mxu0 0.0
  %108 = vmatpush1.msra.mxu0 0.0
  %109 = vmatprep.subr.mxu0 0.0
  %110 = vmatpush1.msra.mxu0 0.0
  %111 = vmatprep.subr.mxu0 0.0
  %112 = vmatpush1.msra.mxu0 0.0
  %113 = vmatprep.subr.mxu0 0.0
  %114 = vmatpush1.msra.mxu0 0.0
  %115 = vmatprep.mubr.f32.mxu0 0.0
  %116 = vmatmul.mubr.f32.gmra.mrb[0].mxu0 %v45
  %v117 = vpop.f32.mrb[0].mxu0
  %v118 = vadd.f32 %v41, %v117
  %v119 = vpop.f32.mrb[0].mxu0
  %120 = vdwg.mxu0
  %v121 = vtanh.pop %v118
  %v122 = vld [vmem:[%s3] sm:$0xff]
  %v123 = vld [vmem:[%s3 + $0x8] sm:$0xff]
  %v124 = vld [vmem:[%s4] sm:$0x1]
  %v126 = vlaneseq
  %v127 = vshrl.u32 %v126, 7
  %v128 = vsub.s32 0, %v127
  %v129 = vrot.slane %v124, %v128
  %vm131 = vcmask 130048
  %v133 = vsel %vm131, %v121, 0
  %135 = vmatprep.subr.mxu0 0.0
  %136 = vmatpush1.msra.mxu0 %v122
  %137 = vmatprep.subr.mxu0 0.0
  %138 = vmatpush1.msra.mxu0 %v123
  %139 = vmatprep.subr.mxu0 0.0
  %140 = vmatpush1.msra.mxu0 0.0
  %141 = vmatprep.subr.mxu0 0.0
  %142 = vmatpush1.msra.mxu0 0.0
  %143 = vmatprep.subr.mxu0 0.0
  %144 = vmatpush1.msra.mxu0 0.0
  %145 = vmatprep.subr.mxu0 0.0
  %146 = vmatpush1.msra.mxu0 0.0
  %147 = vmatprep.subr.mxu0 0.0
  %148 = vmatpush1.msra.mxu0 0.0
  %149 = vmatprep.subr.mxu0 0.0
  %150 = vmatpush1.msra.mxu0 0.0
  %151 = vmatprep.subr.mxu0 0.0
  %152 = vmatpush1.msra.mxu0 0.0
  %153 = vmatprep.subr.mxu0 0.0
  %154 = vmatpush1.msra.mxu0 0.0
  %155 = vmatprep.subr.mxu0 0.0
  %156 = vmatpush1.msra.mxu0 0.0
  %157 = vmatprep.subr.mxu0 0.0
  %158 = vmatpush1.msra.mxu0 0.0
  %159 = vmatprep.subr.mxu0 0.0
  %160 = vmatpush1.msra.mxu0 0.0
  %161 = vmatprep.subr.mxu0 0.0
  %162 = vmatpush1.msra.mxu0 0.0
  %163 = vmatprep.subr.mxu0 0.0
  %164 = vmatpush1.msra.mxu0 0.0
  %165 = vmatprep.subr.mxu0 0.0
  %166 = vmatpush1.msra.mxu0 0.0
  %167 = vmatprep.subr.mxu0 0.0
  %168 = vmatpush1.msra.mxu0 0.0
  %169 = vmatprep.subr.mxu0 0.0
  %170 = vmatpush1.msra.mxu0 0.0
  %171 = vmatprep.subr.mxu0 0.0
  %172 = vmatpush1.msra.mxu0 0.0
  %173 = vmatprep.subr.mxu0 0.0
  %174 = vmatpush1.msra.mxu0 0.0
  %175 = vmatprep.subr.mxu0 0.0
  %176 = vmatpush1.msra.mxu0 0.0
  %177 = vmatprep.subr.mxu0 0.0
  %178 = vmatpush1.msra.mxu0 0.0
  %179 = vmatprep.subr.mxu0 0.0
  %180 = vmatpush1.msra.mxu0 0.0
  %181 = vmatprep.subr.mxu0 0.0
  %182 = vmatpush1.msra.mxu0 0.0
  %183 = vmatprep.subr.mxu0 0.0
  %184 = vmatpush1.msra.mxu0 0.0
  %185 = vmatprep.subr.mxu0 0.0
  %186 = vmatpush1.msra.mxu0 0.0
  %187 = vmatprep.subr.mxu0 0.0
  %188 = vmatpush1.msra.mxu0 0.0
  %189 = vmatprep.subr.mxu0 0.0
  %190 = vmatpush1.msra.mxu0 0.0
  %191 = vmatprep.subr.mxu0 0.0
  %192 = vmatpush1.msra.mxu0 0.0
  %193 = vmatprep.subr.mxu0 0.0
  %194 = vmatpush1.msra.mxu0 0.0
  %195 = vmatprep.subr.mxu0 0.0
  %196 = vmatpush1.msra.mxu0 0.0
  %197 = vmatprep.subr.mxu0 0.0
  %198 = vmatpush1.msra.mxu0 0.0
  %199 = vmatprep.mubr.f32.mxu0 0.0
  %200 = vmatmul.mubr.f32.gmra.mrb[0].mxu0 %v133
  %v201 = vpop.f32.mrb[0].mxu0
  %v202 = vadd.f32 %v129, %v201
  %v203 = vpop.f32.mrb[0].mxu0
  %204 = vdwg.mxu0
  %v205 = vtanh.pop %v202
  %v206 = vld [vmem:[%s5] sm:$0xff]
  %v207 = vld [vmem:[%s5 + $0x8] sm:$0xff]
  %v208 = vld [vmem:[%s5 + $0x10] sm:$0xff]
  %v209 = vld [vmem:[%s5 + $0x18] sm:$0xff]
  %v210 = vld [vmem:[%s6] sm:$0x1]
  %v212 = vlaneseq
  %v213 = vshrl.u32 %v212, 7
  %v214 = vsub.s32 0, %v213
  %v215 = vrot.slane %v210, %v214
  %vm217 = vcmask 261120
  %v219 = vsel %vm217, %v205, 0
  %221 = vmatprep.subr.mxu0 0.0
  %222 = vmatpush1.msra.mxu0 %v206
  %223 = vmatprep.subr.mxu0 0.0
  %224 = vmatpush1.msra.mxu0 %v207
  %225 = vmatprep.subr.mxu0 0.0
  %226 = vmatpush1.msra.mxu0 %v208
  %227 = vmatprep.subr.mxu0 0.0
  %228 = vmatpush1.msra.mxu0 %v209
  %229 = vmatprep.subr.mxu0 0.0
  %230 = vmatpush1.msra.mxu0 0.0
  %231 = vmatprep.subr.mxu0 0.0
  %232 = vmatpush1.msra.mxu0 0.0
  %233 = vmatprep.subr.mxu0 0.0
  %234 = vmatpush1.msra.mxu0 0.0
  %235 = vmatprep.subr.mxu0 0.0
  %236 = vmatpush1.msra.mxu0 0.0
  %237 = vmatprep.subr.mxu0 0.0
  %238 = vmatpush1.msra.mxu0 0.0
  %239 = vmatprep.subr.mxu0 0.0
  %240 = vmatpush1.msra.mxu0 0.0
  %241 = vmatprep.subr.mxu0 0.0
  %242 = vmatpush1.msra.mxu0 0.0
  %243 = vmatprep.subr.mxu0 0.0
  %244 = vmatpush1.msra.mxu0 0.0
  %245 = vmatprep.subr.mxu0 0.0
  %246 = vmatpush1.msra.mxu0 0.0
  %247 = vmatprep.subr.mxu0 0.0
  %248 = vmatpush1.msra.mxu0 0.0
  %249 = vmatprep.subr.mxu0 0.0
  %250 = vmatpush1.msra.mxu0 0.0
  %251 = vmatprep.subr.mxu0 0.0
  %252 = vmatpush1.msra.mxu0 0.0
  %253 = vmatprep.subr.mxu0 0.0
  %254 = vmatpush1.msra.mxu0 0.0
  %255 = vmatprep.subr.mxu0 0.0
  %256 = vmatpush1.msra.mxu0 0.0
  %257 = vmatprep.subr.mxu0 0.0
  %258 = vmatpush1.msra.mxu0 0.0
  %259 = vmatprep.subr.mxu0 0.0
  %260 = vmatpush1.msra.mxu0 0.0
  %261 = vmatprep.subr.mxu0 0.0
  %262 = vmatpush1.msra.mxu0 0.0
  %263 = vmatprep.subr.mxu0 0.0
  %264 = vmatpush1.msra.mxu0 0.0
  %265 = vmatprep.subr.mxu0 0.0
  %266 = vmatpush1.msra.mxu0 0.0
  %267 = vmatprep.subr.mxu0 0.0
  %268 = vmatpush1.msra.mxu0 0.0
  %269 = vmatprep.subr.mxu0 0.0
  %270 = vmatpush1.msra.mxu0 0.0
  %271 = vmatprep.subr.mxu0 0.0
  %272 = vmatpush1.msra.mxu0 0.0
  %273 = vmatprep.subr.mxu0 0.0
  %274 = vmatpush1.msra.mxu0 0.0
  %275 = vmatprep.subr.mxu0 0.0
  %276 = vmatpush1.msra.mxu0 0.0
  %277 = vmatprep.subr.mxu0 0.0
  %278 = vmatpush1.msra.mxu0 0.0
  %279 = vmatprep.subr.mxu0 0.0
  %280 = vmatpush1.msra.mxu0 0.0
  %281 = vmatprep.subr.mxu0 0.0
  %282 = vmatpush1.msra.mxu0 0.0
  %283 = vmatprep.subr.mxu0 0.0
  %284 = vmatpush1.msra.mxu0 0.0
  %285 = vmatprep.mubr.f32.mxu0 0.0
  %286 = vmatmul.mubr.f32.gmra.mrb[0].mxu0 %v219
  %v287 = vpop.f32.mrb[0].mxu0
  %v288 = vadd.f32 %v215, %v287
  %v289 = vpop.f32.mrb[0].mxu0
  %290 = vdwg.mxu0
  %v291 = vld [vmem:[%s7] sm:$0xff]
  %v292 = vld [vmem:[%s7 + $0x8] sm:$0xff]
  %v293 = vld [vmem:[%s7 + $0x10] sm:$0xff]
  %v294 = vld [vmem:[%s7 + $0x18] sm:$0xff]
  %v295 = vld [vmem:[%s8] sm:$0x1]
  %v297 = vlaneseq
  %v298 = vshrl.u32 %v297, 7
  %v299 = vsub.s32 0, %v298
  %v300 = vrot.slane %v295, %v299
  %302 = vmatprep.subr.mxu0 0.0
  %303 = vmatpush1.msra.mxu0 %v291
  %304 = vmatprep.subr.mxu0 0.0
  %305 = vmatpush1.msra.mxu0 %v292
  %306 = vmatprep.subr.mxu0 0.0
  %307 = vmatpush1.msra.mxu0 %v293
  %308 = vmatprep.subr.mxu0 0.0
  %309 = vmatpush1.msra.mxu0 %v294
  %310 = vmatprep.subr.mxu0 0.0
  %311 = vmatpush1.msra.mxu0 0.0
  %312 = vmatprep.subr.mxu0 0.0
  %313 = vmatpush1.msra.mxu0 0.0
  %314 = vmatprep.subr.mxu0 0.0
  %315 = vmatpush1.msra.mxu0 0.0
  %316 = vmatprep.subr.mxu0 0.0
  %317 = vmatpush1.msra.mxu0 0.0
  %318 = vmatprep.subr.mxu0 0.0
  %319 = vmatpush1.msra.mxu0 0.0
  %320 = vmatprep.subr.mxu0 0.0
  %321 = vmatpush1.msra.mxu0 0.0
  %322 = vmatprep.subr.mxu0 0.0
  %323 = vmatpush1.msra.mxu0 0.0
  %324 = vmatprep.subr.mxu0 0.0
  %325 = vmatpush1.msra.mxu0 0.0
  %326 = vmatprep.subr.mxu0 0.0
  %327 = vmatpush1.msra.mxu0 0.0
  %328 = vmatprep.subr.mxu0 0.0
  %329 = vmatpush1.msra.mxu0 0.0
  %330 = vmatprep.subr.mxu0 0.0
  %331 = vmatpush1.msra.mxu0 0.0
  %332 = vmatprep.subr.mxu0 0.0
  %333 = vmatpush1.msra.mxu0 0.0
  %334 = vmatprep.subr.mxu0 0.0
  %335 = vmatpush1.msra.mxu0 0.0
  %336 = vmatprep.subr.mxu0 0.0
  %337 = vmatpush1.msra.mxu0 0.0
  %338 = vmatprep.subr.mxu0 0.0
  %339 = vmatpush1.msra.mxu0 0.0
  %340 = vmatprep.subr.mxu0 0.0
  %341 = vmatpush1.msra.mxu0 0.0
  %342 = vmatprep.subr.mxu0 0.0
  %343 = vmatpush1.msra.mxu0 0.0
  %344 = vmatprep.subr.mxu0 0.0
  %345 = vmatpush1.msra.mxu0 0.0
  %346 = vmatprep.subr.mxu0 0.0
  %347 = vmatpush1.msra.mxu0 0.0
  %348 = vmatprep.subr.mxu0 0.0
  %349 = vmatpush1.msra.mxu0 0.0
  %350 = vmatprep.subr.mxu0 0.0
  %351 = vmatpush1.msra.mxu0 0.0
  %352 = vmatprep.subr.mxu0 0.0
  %353 = vmatpush1.msra.mxu0 0.0
  %354 = vmatprep.subr.mxu0 0.0
  %355 = vmatpush1.msra.mxu0 0.0
  %356 = vmatprep.subr.mxu0 0.0
  %357 = vmatpush1.msra.mxu0 0.0
  %358 = vmatprep.subr.mxu0 0.0
  %359 = vmatpush1.msra.mxu0 0.0
  %360 = vmatprep.subr.mxu0 0.0
  %361 = vmatpush1.msra.mxu0 0.0
  %362 = vmatprep.subr.mxu0 0.0
  %363 = vmatpush1.msra.mxu0 0.0
  %364 = vmatprep.subr.mxu0 0.0
  %365 = vmatpush1.msra.mxu0 0.0
  %366 = vmatprep.mubr.f32.mxu0 0.0
  %367 = vmatmul.mubr.f32.gmra.mrb[0].mxu0 %v219
  %v368 = vpop.f32.mrb[0].mxu0
  %v369 = vadd.f32 %v300, %v368
  %v370 = vpop.f32.mrb[0].mxu0
  %371 = vdwg.mxu0
  %vm372 = vcmask 15360
  %373 = vst.msk [vmem:[%s9] sm:$0xff] %vm372, %v288
  %374 = vst.msk [vmem:[%s10] sm:$0xff] %vm372, %v369
  // Predicated region
  $region38: #{tpu_custom_call.1} parent=0 // pred_check
    _
  $region39: #{tpu_custom_call.1} parent=0 // pred_check_branch
    %376 = sbr.rel (0) target = $region41
  $region40: #{tpu_custom_call.1} parent=0 // pred_region
    _
  $region41: #{tpu_custom_call.1} parent=0 // pred_fallthru
    _
  // Predicated region
  $region42: #{tpu_custom_call.1} parent=0 // pred_check
    _
  $region43: #{tpu_custom_call.1} parent=0 // pred_check_branch
    %378 = sbr.rel (0) target = $region45
  $region44: #{tpu_custom_call.1} parent=0 // pred_region
    _
  $region45: #{tpu_custom_call.1} parent=0 // pred_fallthru
    _
  // Predicated region
  $region46: #{tpu_custom_call.1} parent=0 // pred_check
    _
  $region47: #{tpu_custom_call.1} parent=0 // pred_check_branch
    %380 = sbr.rel (0) target = $region49
  $region48: #{tpu_custom_call.1} parent=0 // pred_region
    _
  $region49: #{tpu_custom_call.1} parent=0 // pred_fallthru
    _
  // Predicated region
  $region50: #{tpu_custom_call.1} parent=0 // pred_check
    _
  $region51: #{tpu_custom_call.1} parent=0 // pred_check_branch
    %382 = sbr.rel (0) target = $region53
  $region52: #{tpu_custom_call.1} parent=0 // pred_region
    _
  $region53: #{tpu_custom_call.1} parent=0 // pred_fallthru
    _

</llo_original>
